<compile_context>
chip_gen: v7x
topology: tpu7x:2x2x1
jax: 0.10.0
libtpu: 0.0.40
codegen_flags: <defaults>
</compile_context>

<pallas_src>
import jax
import jax.numpy as jnp
from jax.experimental import pallas as pl
from jax.experimental.pallas import tpu as pltpu

_OUT_PAD = 128  # lane-dense output slab width


def _make_encoder_kernel(n_hidden_layers: int, negative_slope: float):
    """Kernel: n_hidden (Linear + LeakyReLU) blocks, then one fused padded head."""

    def kernel(*refs):
        # refs = [x, (w_i, b_i) * n_hidden, w_head, b_head, out_slab]
        x_ref = refs[0]
        idx = 1
        h = x_ref[...]
        for _ in range(n_hidden_layers):
            w_ref, b_ref = refs[idx], refs[idx + 1]
            idx += 2
            h = jnp.dot(h, w_ref[...], preferred_element_type=jnp.float32) + b_ref[...]
            # LeakyReLU (slope in [0,1) -> maximum form is exact).
            h = jnp.maximum(h, negative_slope * h)
            # TODO(synk): Dropout(p=0.0) is identity (eval semantics); training-mode
            # dropout would need pltpu.prng_seed/prng_random_bits.
        w_head_ref, b_head_ref = refs[idx], refs[idx + 1]
        out_ref = refs[idx + 2]
        out_ref[...] = (
            jnp.dot(h, w_head_ref[...], preferred_element_type=jnp.float32)
            + b_head_ref[...]
        )

    return kernel


def init_encoder_params(key, input_dim, nlayers, latent_dim, delta):
    """Deterministic init mimicking torch.nn.Linear default (U(-1/sqrt(fan_in), ...)).
    Weights stored torch-style as (out, in); biases as (out,)."""

    def linear_init(key, fan_in, fan_out):
        kw, kb = jax.random.split(key)
        bound = 1.0 / jnp.sqrt(fan_in)
        w = jax.random.uniform(kw, (fan_out, fan_in), jnp.float32, -bound, bound)
        b = jax.random.uniform(kb, (fan_out,), jnp.float32, -bound, bound)
        return w, b

    params = {"encoder": []}
    nunits = input_dim
    if isinstance(nlayers, int):
        dims = []
        for _ in range(nlayers):
            dims.append(nunits - delta)
            nunits -= delta
    else:
        dims = list(nlayers)
    nunits = input_dim
    for d in dims:
        key, sub = jax.random.split(key)
        params["encoder"].append(linear_init(sub, nunits, d))
        nunits = d
    key, kmu = jax.random.split(key)
    key, klv = jax.random.split(key)
    params["fc_mu"] = linear_init(kmu, nunits, latent_dim)
    params["fc_log_var"] = linear_init(klv, nunits, latent_dim)
    return params


def prepare_encoder_operands(params, latent_dim):
    """One-time operand prep: transpose weights to (in, out), biases to (1, out),
    fuse + zero-pad the mu/log_var head to a 128-lane-wide slab."""
    hidden_ops = []
    for w, b in params["encoder"]:
        hidden_ops.append(jnp.asarray(w, jnp.float32).T)        # (in, out)
        hidden_ops.append(jnp.asarray(b, jnp.float32)[None, :])  # (1, out)

    w_mu, b_mu = params["fc_mu"]
    w_lv, b_lv = params["fc_log_var"]
    hidden_dim = w_mu.shape[1]
    # Fused head: columns [0:latent) -> mu, [latent:2*latent) -> log_var.
    w_head = jnp.concatenate(
        [jnp.asarray(w_mu, jnp.float32).T, jnp.asarray(w_lv, jnp.float32).T], axis=1
    )
    b_head = jnp.concatenate(
        [jnp.asarray(b_mu, jnp.float32), jnp.asarray(b_lv, jnp.float32)], axis=0
    )[None, :]
    out_pad = max(_OUT_PAD, 2 * latent_dim)
    w_head = jnp.pad(w_head, ((0, 0), (0, out_pad - 2 * latent_dim)))
    b_head = jnp.pad(b_head, ((0, 0), (0, out_pad - 2 * latent_dim)))
    assert w_head.shape == (hidden_dim, out_pad)

    n_hidden = len(params["encoder"])
    operands = hidden_ops + [w_head, b_head]
    return operands, n_hidden, out_pad


def encoder_forward(x, operands, n_hidden, out_pad, latent_dim,
                    negative_slope=0.1, batch_tile=128):
    """Calls the Pallas kernel. Returns (mu, log_var)."""
    B, input_dim = x.shape
    tb = batch_tile
    padded_b = pl.cdiv(B, tb) * tb
    if padded_b != B:
        x = jnp.pad(x, ((0, padded_b - B), (0, 0)))
    grid = (padded_b // tb,)

    kernel = _make_encoder_kernel(n_hidden, negative_slope)

    # x / output: blocked on batch. Weights & biases: full-array blocks, fixed
    # index (0, 0) -> stay resident in VMEM across grid iterations.
    in_specs = [pl.BlockSpec((tb, input_dim), lambda i: (i, 0))]
    for op in operands:
        shape = op.shape
        in_specs.append(pl.BlockSpec(shape, lambda i: (0, 0)))
    out_specs = pl.BlockSpec((tb, out_pad), lambda i: (i, 0))

    fn = pl.pallas_call(
        kernel,
        out_shape=jax.ShapeDtypeStruct((padded_b, out_pad), jnp.float32),
        grid=grid,
        in_specs=in_specs,
        out_specs=out_specs,
        compiler_params=pltpu.CompilerParams(dimension_semantics=("parallel",)),
    )
    slab = fn(x, *operands)
    mu = slab[:B, :latent_dim]
    log_var = slab[:B, latent_dim : 2 * latent_dim]
    return mu, log_var


def encoder_forward_ref(x, params, negative_slope=0.1):
    """Pure-JAX reference for correctness checking."""
    h = x
    for w, b in params["encoder"]:
        h = h @ w.T + b
        h = jnp.where(h >= 0, h, negative_slope * h)
    mu = h @ params["fc_mu"][0].T + params["fc_mu"][1]
    lv = h @ params["fc_log_var"][0].T + params["fc_log_var"][1]
    return mu, lv


if __name__ == "__main__":
    # Small shapes consistent with the module: MLP over feature vectors.
    BATCH = 200          # not a multiple of the batch tile -> exercises padding
    INPUT_DIM = 32
    NLAYERS = 2          # int branch of __init__
    DELTA = 8            # hidden dims: 32 -> 24 -> 16
    LATENT_DIM = 8
    NEG_SLOPE = 0.1
    BATCH_TILE = 128     # grid=(2,) after padding to 256

    key = jax.random.PRNGKey(0)
    key, kx = jax.random.split(key)
    x = jax.random.normal(kx, (BATCH, INPUT_DIM), dtype=jnp.float32)

    params = init_encoder_params(key, INPUT_DIM, NLAYERS, LATENT_DIM, DELTA)

    # One-time operand preparation (transposes, head fusion, lane padding).
    operands, n_hidden, out_pad = prepare_encoder_operands(params, LATENT_DIM)

    mu, log_var = encoder_forward(
        x, operands, n_hidden, out_pad, LATENT_DIM,
        negative_slope=NEG_SLOPE, batch_tile=BATCH_TILE,
    )
    mu = jax.block_until_ready(mu)
    log_var = jax.block_until_ready(log_var)

    mu_ref, lv_ref = encoder_forward_ref(x, params, NEG_SLOPE)
    assert mu.shape == (BATCH, LATENT_DIM) and log_var.shape == (BATCH, LATENT_DIM)
    assert jnp.allclose(mu, mu_ref, atol=1e-5, rtol=1e-5)
    assert jnp.allclose(log_var, lv_ref, atol=1e-5, rtol=1e-5)

    print("KERNEL_OK")
</pallas_src>

<mosaic_0001>
module attributes {stable_mosaic.version = 11 : i64} {
  func.func @kernel(%arg0: i32, %arg1: memref<128x32xf32, #tpu.memory_space<vmem>>, %arg2: memref<32x24xf32, #tpu.memory_space<vmem>>, %arg3: memref<1x24xf32, #tpu.memory_space<vmem>>, %arg4: memref<24x16xf32, #tpu.memory_space<vmem>>, %arg5: memref<1x16xf32, #tpu.memory_space<vmem>>, %arg6: memref<16x128xf32, #tpu.memory_space<vmem>>, %arg7: memref<1x128xf32, #tpu.memory_space<vmem>>, %arg8: memref<128x128xf32, #tpu.memory_space<vmem>>) attributes {dimension_semantics = [#tpu.dimension_semantics<parallel>], iteration_bounds = array<i64: 2>, scalar_prefetch = 0 : i64, scratch_operands = 0 : i64, tpu.core_type = #tpu.core_type<tc>, window_params = [{transform_indices = @transform_0, window_bounds = array<i64: 128, 32>}, {pipeline_mode = #tpu.pipeline_mode<synchronous>, transform_indices = @transform_1, window_bounds = array<i64: 32, 24>}, {pipeline_mode = #tpu.pipeline_mode<synchronous>, transform_indices = @transform_2, window_bounds = array<i64: 1, 24>}, {pipeline_mode = #tpu.pipeline_mode<synchronous>, transform_indices = @transform_3, window_bounds = array<i64: 24, 16>}, {pipeline_mode = #tpu.pipeline_mode<synchronous>, transform_indices = @transform_4, window_bounds = array<i64: 1, 16>}, {pipeline_mode = #tpu.pipeline_mode<synchronous>, transform_indices = @transform_5, window_bounds = array<i64: 16, 128>}, {pipeline_mode = #tpu.pipeline_mode<synchronous>, transform_indices = @transform_6, window_bounds = array<i64: 1, 128>}, {transform_indices = @transform_7, window_bounds = array<i64: 128, 128>}]} {
    %c0 = arith.constant 0 : index
    %c0_0 = arith.constant 0 : index
    %0 = vector.load %arg1[%c0, %c0_0] : memref<128x32xf32, #tpu.memory_space<vmem>>, vector<128x32xf32>
    %c0_1 = arith.constant 0 : index
    %c0_2 = arith.constant 0 : index
    %1 = vector.load %arg2[%c0_1, %c0_2] : memref<32x24xf32, #tpu.memory_space<vmem>>, vector<32x24xf32>
    %cst = arith.constant dense<0.000000e+00> : vector<128x24xf32>
    %2 = tpu.matmul %0, %1, %cst {dimension_numbers = #tpu.dot_dimension_numbers<[1], [0], [0], [1], [0, 0, 1, 1], [], []>} : vector<128x32xf32>, vector<32x24xf32>, vector<128x24xf32> -> vector<128x24xf32>
    %c0_3 = arith.constant 0 : index
    %c0_4 = arith.constant 0 : index
    %3 = vector.load %arg3[%c0_3, %c0_4] : memref<1x24xf32, #tpu.memory_space<vmem>>, vector<1x24xf32>
    %4 = vector.broadcast %3 : vector<1x24xf32> to vector<128x24xf32>
    %5 = arith.addf %2, %4 : vector<128x24xf32>
    %cst_5 = arith.constant 1.000000e-01 : f32
    %6 = vector.broadcast %cst_5 : f32 to vector<128x24xf32>
    %7 = arith.mulf %6, %5 : vector<128x24xf32>
    %8 = arith.maximumf %5, %7 : vector<128x24xf32>
    %c0_6 = arith.constant 0 : index
    %c0_7 = arith.constant 0 : index
    %9 = vector.load %arg4[%c0_6, %c0_7] : memref<24x16xf32, #tpu.memory_space<vmem>>, vector<24x16xf32>
    %cst_8 = arith.constant dense<0.000000e+00> : vector<128x16xf32>
    %10 = tpu.matmul %8, %9, %cst_8 {dimension_numbers = #tpu.dot_dimension_numbers<[1], [0], [0], [1], [0, 0, 1, 1], [], []>} : vector<128x24xf32>, vector<24x16xf32>, vector<128x16xf32> -> vector<128x16xf32>
    %c0_9 = arith.constant 0 : index
    %c0_10 = arith.constant 0 : index
    %11 = vector.load %arg5[%c0_9, %c0_10] : memref<1x16xf32, #tpu.memory_space<vmem>>, vector<1x16xf32>
    %12 = vector.broadcast %11 : vector<1x16xf32> to vector<128x16xf32>
    %13 = arith.addf %10, %12 : vector<128x16xf32>
    %cst_11 = arith.constant 1.000000e-01 : f32
    %14 = vector.broadcast %cst_11 : f32 to vector<128x16xf32>
    %15 = arith.mulf %14, %13 : vector<128x16xf32>
    %16 = arith.maximumf %13, %15 : vector<128x16xf32>
    %c0_12 = arith.constant 0 : index
    %c0_13 = arith.constant 0 : index
    %17 = vector.load %arg6[%c0_12, %c0_13] : memref<16x128xf32, #tpu.memory_space<vmem>>, vector<16x128xf32>
    %cst_14 = arith.constant dense<0.000000e+00> : vector<128x128xf32>
    %18 = tpu.matmul %16, %17, %cst_14 {dimension_numbers = #tpu.dot_dimension_numbers<[1], [0], [0], [1], [0, 0, 1, 1], [], []>} : vector<128x16xf32>, vector<16x128xf32>, vector<128x128xf32> -> vector<128x128xf32>
    %c0_15 = arith.constant 0 : index
    %c0_16 = arith.constant 0 : index
    %19 = vector.load %arg7[%c0_15, %c0_16] : memref<1x128xf32, #tpu.memory_space<vmem>>, vector<1x128xf32>
    %20 = vector.broadcast %19 : vector<1x128xf32> to vector<128x128xf32>
    %21 = arith.addf %18, %20 : vector<128x128xf32>
    %c0_17 = arith.constant 0 : index
    %c0_18 = arith.constant 0 : index
    %22 = vector.load %arg8[%c0_17, %c0_18] : memref<128x128xf32, #tpu.memory_space<vmem>>, vector<128x128xf32>
    tpu.vector_store %arg8[%c0_17, %c0_18], %21 {strides = array<i32>} : memref<128x128xf32, #tpu.memory_space<vmem>>, vector<128x128xf32>,
    return
  }
  func.func @transform_0(%arg0: i32) -> (i32, i32) {
    %c0_i32 = arith.constant 0 : i32
    %c0_i32_0 = arith.constant 0 : i32
    return %arg0, %c0_i32 : i32, i32
  }
  func.func @transform_1(%arg0: i32) -> (i32, i32) {
    %c0_i32 = arith.constant 0 : i32
    %c0_i32_0 = arith.constant 0 : i32
    %c0_i32_1 = arith.constant 0 : i32
    return %c0_i32, %c0_i32_0 : i32, i32
  }
  func.func @transform_2(%arg0: i32) -> (i32, i32) {
    %c0_i32 = arith.constant 0 : i32
    %c0_i32_0 = arith.constant 0 : i32
    %c0_i32_1 = arith.constant 0 : i32
    return %c0_i32, %c0_i32_0 : i32, i32
  }
  func.func @transform_3(%arg0: i32) -> (i32, i32) {
    %c0_i32 = arith.constant 0 : i32
    %c0_i32_0 = arith.constant 0 : i32
    %c0_i32_1 = arith.constant 0 : i32
    return %c0_i32, %c0_i32_0 : i32, i32
  }
  func.func @transform_4(%arg0: i32) -> (i32, i32) {
    %c0_i32 = arith.constant 0 : i32
    %c0_i32_0 = arith.constant 0 : i32
    %c0_i32_1 = arith.constant 0 : i32
    return %c0_i32, %c0_i32_0 : i32, i32
  }
  func.func @transform_5(%arg0: i32) -> (i32, i32) {
    %c0_i32 = arith.constant 0 : i32
    %c0_i32_0 = arith.constant 0 : i32
    %c0_i32_1 = arith.constant 0 : i32
    return %c0_i32, %c0_i32_0 : i32, i32
  }
  func.func @transform_6(%arg0: i32) -> (i32, i32) {
    %c0_i32 = arith.constant 0 : i32
    %c0_i32_0 = arith.constant 0 : i32
    %c0_i32_1 = arith.constant 0 : i32
    return %c0_i32, %c0_i32_0 : i32, i32
  }
  func.func @transform_7(%arg0: i32) -> (i32, i32) {
    %c0_i32 = arith.constant 0 : i32
    %c0_i32_0 = arith.constant 0 : i32
    return %arg0, %c0_i32 : i32, i32
  }
}

</mosaic_0001>

<llo_original>
// kernel: tpu_custom_call.1
$region0: #{tpu_custom_call.1}
  #allocation0 [shape = 'u32[]', space=smem, size = 0x4, offset = 0x4, fixed_abs, tag = 'smem constant byte address 0x4 - core index']
  #allocation1 [shape = 'u32[144,128]{1,0:T(1,128)}', space=vmem, size = 0x12000, scoped, tag = 'internal scratch']
  %s0 = inlined_call_operand.vmem [shape: f32[256,32], index: 0, kind: input, shape index: {}]
  %s1 = inlined_call_operand.vmem [shape: f32[32,24], index: 1, kind: input, shape index: {}]
  %s2 = inlined_call_operand.vmem [shape: f32[1,24], index: 2, kind: input, shape index: {}]
  %s3 = inlined_call_operand.vmem [shape: f32[24,16], index: 3, kind: input, shape index: {}]
  %s4 = inlined_call_operand.vmem [shape: f32[1,16], index: 4, kind: input, shape index: {}]
  %s5 = inlined_call_operand.vmem [shape: f32[16,128], index: 5, kind: input, shape index: {}]
  %s6 = inlined_call_operand.vmem [shape: f32[1,128], index: 6, kind: input, shape index: {}]
  %s7 = inlined_call_operand.hbm [shape: f32[256,128], index: 7, kind: output, shape index: {}]
  %s8 = sld [smem:[#allocation0]]
  $region61: #{tpu_custom_call.1} parent=0
    _
  %s10 = ssub.s32 1, %s8
  %s11 = scalar_select 0, %s10, %s8
  $region1: #{tpu_custom_call.1} parent=0
    #allocation2 [shape = 'u8[131072]{0}', space=vmem, size = 0x20000, scoped, tag = 'output window, operand 0']
    #allocation3 [shape = 's32[2]{0}', space=sflag, size = 0x8, scoped, tag = 'scoped memory for tpu_custom_call.1']
    %12 = vsyncpa [#allocation3], 0
    %s13 = scalar_lea.sflag [#allocation3], 1
    %14 = vsyncpa %s13, 0
    loop: start=0, step=1, limit=4
    $region2: #{tpu_custom_call.1} parent=1 // loop_pre_header
      _
    $region3: #{tpu_custom_call.1} parent=1 // loop_header
      %s16 = sphi 0, %s20
      %p17 = scmp.ge.s32.totalorder %s16, 4
      %s26 = sphi 0, %s28
      %s29 = sphi 0, %s26
      %s30 = sphi 0, %s29
      %s46 = sphi 0, %s30
      %s50 = sphi 0, %s50
      %s52 = sphi 0, %s50
      %s53 = sphi 0, %s52
      %s67 = sphi 0, %s53
      %s71 = sphi 0, %s71
      %s73 = sphi 0, %s71
      %s74 = sphi 0, %s73
      %s88 = sphi 0, %s74
      %s92 = sphi 0, %s92
      %s94 = sphi 0, %s92
      %s95 = sphi 0, %s94
      %s109 = sphi 0, %s95
      %s113 = sphi 0, %s113
      %s115 = sphi 0, %s113
      %s116 = sphi 0, %s115
      %s130 = sphi 0, %s116
      %s134 = sphi 0, %s134
      %s136 = sphi 0, %s134
      %s137 = sphi 0, %s136
      %s151 = sphi 0, %s137
      %s155 = sphi 0, %s155
      %s157 = sphi 0, %s155
      %s158 = sphi 0, %s157
      %s172 = sphi 0, %s158
      %s178 = sphi 0, %s180
      %s181 = sphi 0, %s178
      %s182 = sphi 0, %s181
      %s198 = sphi 0, %s182
    $region4: #{tpu_custom_call.1} parent=1 // loop_header_branch
      %19 = sbr.rel (%p17) target = $region8
    $region5: #{tpu_custom_call.1} parent=1 // loop_body
      %s21 = ssub.s32 %s16, 1
      %s22 = ssub.s32 %s16, 2
      %s23 = sadd.s32 %s16, 1
      %s24 = ssub.s32 %s16, %s23
      %p25 = scmp.eq.s32.totalorder %s24, 0
      %s27 = sadd.s32 %s26, 1
      %s28 = scalar_select %p25, %s26, %s27
      %p31 = pneg %p25
      %p32 = scmp.eq.s32.totalorder %s16, 1
      %p33 = por %p31, %p32
      %p34 = scmp.ne.s32.totalorder %s26, %s29
      %p35 = scmp.eq.s32.totalorder %s16, 0
      %p36 = por %p34, %p35
      %p37 = scmp.ne.s32.totalorder %s26, %s29
      %p38 = scmp.eq.s32.totalorder %s21, 1
      %p39 = por %p37, %p38
      %p40 = scmp.ne.s32.totalorder %s29, %s30
      %p41 = scmp.eq.s32.totalorder %s21, 0
      %p42 = por %p40, %p41
      %p43 = scmp.ne.s32.totalorder %s29, %s30
      %p44 = scmp.eq.s32.totalorder %s22, 1
      %p45 = por %p43, %p44
      %p47 = scmp.ne.s32.totalorder %s30, %s46
      %p48 = scmp.eq.s32.totalorder %s22, 0
      %p49 = por %p47, %p48
      %s51 = sadd.s32 %s50, 1
      %p54 = scmp.eq.s32.totalorder %s16, 1
      %p55 = scmp.ne.s32.totalorder %s50, %s52
      %p56 = scmp.eq.s32.totalorder %s16, 0
      %p57 = por %p55, %p56
      %p58 = scmp.ne.s32.totalorder %s50, %s52
      %p59 = scmp.eq.s32.totalorder %s21, 1
      %p60 = por %p58, %p59
      %p61 = scmp.ne.s32.totalorder %s52, %s53
      %p62 = scmp.eq.s32.totalorder %s21, 0
      %p63 = por %p61, %p62
      %p64 = scmp.ne.s32.totalorder %s52, %s53
      %p65 = scmp.eq.s32.totalorder %s22, 1
      %p66 = por %p64, %p65
      %p68 = scmp.ne.s32.totalorder %s53, %s67
      %p69 = scmp.eq.s32.totalorder %s22, 0
      %p70 = por %p68, %p69
      %s72 = sadd.s32 %s71, 1
      %p75 = scmp.eq.s32.totalorder %s16, 1
      %p76 = scmp.ne.s32.totalorder %s71, %s73
      %p77 = scmp.eq.s32.totalorder %s16, 0
      %p78 = por %p76, %p77
      %p79 = scmp.ne.s32.totalorder %s71, %s73
      %p80 = scmp.eq.s32.totalorder %s21, 1
      %p81 = por %p79, %p80
      %p82 = scmp.ne.s32.totalorder %s73, %s74
      %p83 = scmp.eq.s32.totalorder %s21, 0
      %p84 = por %p82, %p83
      %p85 = scmp.ne.s32.totalorder %s73, %s74
      %p86 = scmp.eq.s32.totalorder %s22, 1
      %p87 = por %p85, %p86
      %p89 = scmp.ne.s32.totalorder %s74, %s88
      %p90 = scmp.eq.s32.totalorder %s22, 0
      %p91 = por %p89, %p90
      %s93 = sadd.s32 %s92, 1
      %p96 = scmp.eq.s32.totalorder %s16, 1
      %p97 = scmp.ne.s32.totalorder %s92, %s94
      %p98 = scmp.eq.s32.totalorder %s16, 0
      %p99 = por %p97, %p98
      %p100 = scmp.ne.s32.totalorder %s92, %s94
      %p101 = scmp.eq.s32.totalorder %s21, 1
      %p102 = por %p100, %p101
      %p103 = scmp.ne.s32.totalorder %s94, %s95
      %p104 = scmp.eq.s32.totalorder %s21, 0
      %p105 = por %p103, %p104
      %p106 = scmp.ne.s32.totalorder %s94, %s95
      %p107 = scmp.eq.s32.totalorder %s22, 1
      %p108 = por %p106, %p107
      %p110 = scmp.ne.s32.totalorder %s95, %s109
      %p111 = scmp.eq.s32.totalorder %s22, 0
      %p112 = por %p110, %p111
      %s114 = sadd.s32 %s113, 1
      %p117 = scmp.eq.s32.totalorder %s16, 1
      %p118 = scmp.ne.s32.totalorder %s113, %s115
      %p119 = scmp.eq.s32.totalorder %s16, 0
      %p120 = por %p118, %p119
      %p121 = scmp.ne.s32.totalorder %s113, %s115
      %p122 = scmp.eq.s32.totalorder %s21, 1
      %p123 = por %p121, %p122
      %p124 = scmp.ne.s32.totalorder %s115, %s116
      %p125 = scmp.eq.s32.totalorder %s21, 0
      %p126 = por %p124, %p125
      %p127 = scmp.ne.s32.totalorder %s115, %s116
      %p128 = scmp.eq.s32.totalorder %s22, 1
      %p129 = por %p127, %p128
      %p131 = scmp.ne.s32.totalorder %s116, %s130
      %p132 = scmp.eq.s32.totalorder %s22, 0
      %p133 = por %p131, %p132
      %s135 = sadd.s32 %s134, 1
      %p138 = scmp.eq.s32.totalorder %s16, 1
      %p139 = scmp.ne.s32.totalorder %s134, %s136
      %p140 = scmp.eq.s32.totalorder %s16, 0
      %p141 = por %p139, %p140
      %p142 = scmp.ne.s32.totalorder %s134, %s136
      %p143 = scmp.eq.s32.totalorder %s21, 1
      %p144 = por %p142, %p143
      %p145 = scmp.ne.s32.totalorder %s136, %s137
      %p146 = scmp.eq.s32.totalorder %s21, 0
      %p147 = por %p145, %p146
      %p148 = scmp.ne.s32.totalorder %s136, %s137
      %p149 = scmp.eq.s32.totalorder %s22, 1
      %p150 = por %p148, %p149
      %p152 = scmp.ne.s32.totalorder %s137, %s151
      %p153 = scmp.eq.s32.totalorder %s22, 0
      %p154 = por %p152, %p153
      %s156 = sadd.s32 %s155, 1
      %p159 = scmp.eq.s32.totalorder %s16, 1
      %p160 = scmp.ne.s32.totalorder %s155, %s157
      %p161 = scmp.eq.s32.totalorder %s16, 0
      %p162 = por %p160, %p161
      %p163 = scmp.ne.s32.totalorder %s155, %s157
      %p164 = scmp.eq.s32.totalorder %s21, 1
      %p165 = por %p163, %p164
      %p166 = scmp.ne.s32.totalorder %s157, %s158
      %p167 = scmp.eq.s32.totalorder %s21, 0
      %p168 = por %p166, %p167
      %p169 = scmp.ne.s32.totalorder %s157, %s158
      %p170 = scmp.eq.s32.totalorder %s22, 1
      %p171 = por %p169, %p170
      %p173 = scmp.ne.s32.totalorder %s158, %s172
      %p174 = scmp.eq.s32.totalorder %s22, 0
      %p175 = por %p173, %p174
      %s176 = ssub.s32 %s16, %s23
      %p177 = scmp.eq.s32.totalorder %s176, 0
      %s179 = sadd.s32 %s178, 1
      %s180 = scalar_select %p177, %s178, %s179
      %p183 = pneg %p177
      %p184 = scmp.eq.s32.totalorder %s16, 1
      %p185 = por %p183, %p184
      %p186 = scmp.ne.s32.totalorder %s178, %s181
      %p187 = scmp.eq.s32.totalorder %s16, 0
      %p188 = por %p186, %p187
      %p189 = scmp.ne.s32.totalorder %s178, %s181
      %p190 = scmp.eq.s32.totalorder %s21, 1
      %p191 = por %p189, %p190
      %p192 = scmp.ne.s32.totalorder %s181, %s182
      %p193 = scmp.eq.s32.totalorder %s21, 0
      %p194 = por %p192, %p193
      %p195 = scmp.ne.s32.totalorder %s181, %s182
      %p196 = scmp.eq.s32.totalorder %s22, 1
      %p197 = por %p195, %p196
      %p199 = scmp.ne.s32.totalorder %s182, %s198
      %p200 = scmp.eq.s32.totalorder %s22, 0
      %p201 = por %p199, %p200
      %p202 = scmp.le.s32.totalorder 1, %s16
      %p203 = scmp.lt.s32.totalorder %s16, 3
      %p204 = pnand %p202, %p203
      %p205 = pneg %p204
      // Predicated region
      $region9: #{tpu_custom_call.1} parent=5 // pred_check
        _
      $region10: #{tpu_custom_call.1} parent=5 // pred_check_branch
        %207 = sbr.rel (%p204) target = $region12
      $region11: #{tpu_custom_call.1} parent=5 // pred_region
        %s208 = ssub.s32 %s16, 1
        // Predicated region
        $region13: #{tpu_custom_call.1} parent=11 // pred_check
          %p209 = pneg %p63
        $region14: #{tpu_custom_call.1} parent=11 // pred_check_branch
          %211 = sbr.rel (%p209) target = $region16
        $region15: #{tpu_custom_call.1} parent=11 // pred_region
          _
        $region16: #{tpu_custom_call.1} parent=11 // pred_fallthru
          _
        // Predicated region
        $region17: #{tpu_custom_call.1} parent=11 // pred_check
          %p212 = pneg %p84
        $region18: #{tpu_custom_call.1} parent=11 // pred_check_branch
          %214 = sbr.rel (%p212) target = $region20
        $region19: #{tpu_custom_call.1} parent=11 // pred_region
          _
        $region20: #{tpu_custom_call.1} parent=11 // pred_fallthru
          _
        // Predicated region
        $region21: #{tpu_custom_call.1} parent=11 // pred_check
          %p215 = pneg %p105
        $region22: #{tpu_custom_call.1} parent=11 // pred_check_branch
          %217 = sbr.rel (%p215) target = $region24
        $region23: #{tpu_custom_call.1} parent=11 // pred_region
          _
        $region24: #{tpu_custom_call.1} parent=11 // pred_fallthru
          _
        // Predicated region
        $region25: #{tpu_custom_call.1} parent=11 // pred_check
          %p218 = pneg %p126
        $region26: #{tpu_custom_call.1} parent=11 // pred_check_branch
          %220 = sbr.rel (%p218) target = $region28
        $region27: #{tpu_custom_call.1} parent=11 // pred_region
          _
        $region28: #{tpu_custom_call.1} parent=11 // pred_fallthru
          _
        // Predicated region
        $region29: #{tpu_custom_call.1} parent=11 // pred_check
          %p221 = pneg %p147
        $region30: #{tpu_custom_call.1} parent=11 // pred_check_branch
          %223 = sbr.rel (%p221) target = $region32
        $region31: #{tpu_custom_call.1} parent=11 // pred_region
          _
        $region32: #{tpu_custom_call.1} parent=11 // pred_fallthru
          _
        // Predicated region
        $region33: #{tpu_custom_call.1} parent=11 // pred_check
          %p224 = pneg %p168
        $region34: #{tpu_custom_call.1} parent=11 // pred_check_branch
          %226 = sbr.rel (%p224) target = $region36
        $region35: #{tpu_custom_call.1} parent=11 // pred_region
          _
        $region36: #{tpu_custom_call.1} parent=11 // pred_fallthru
          _
      $region12: #{tpu_custom_call.1} parent=5 // pred_fallthru
        _
      %p227 = scmp.lt.s32.totalorder %s16, 2
      // Predicated region
      $region37: #{tpu_custom_call.1} parent=5 // pred_check
        %p228 = pneg %p227
      $region38: #{tpu_custom_call.1} parent=5 // pred_check_branch
        %230 = sbr.rel (%p228) target = $region40
      $region39: #{tpu_custom_call.1} parent=5 // pred_region
        // Predicated region
        $region41: #{tpu_custom_call.1} parent=39 // pred_check
          %p231 = pneg %p36
        $region42: #{tpu_custom_call.1} parent=39 // pred_check_branch
          %233 = sbr.rel (%p231) target = $region44
        $region43: #{tpu_custom_call.1} parent=39 // pred_region
          %s234 = smul.u32 16, %s16
          %p235 = scmp.lt.s32.totalorder %s234, 31
          %s236 = scalar_select %p235, %s234, 31
          %s237 = smul.addr %s236, 8
          %s238 = scalar_lea.vmem %s0, %s237
          %s239 = smul.u32 16, %s16
        $region44: #{tpu_custom_call.1} parent=39 // pred_fallthru
          _
      $region40: #{tpu_custom_call.1} parent=5 // pred_fallthru
        _
      %p240 = scmp.le.s32.totalorder 1, %s16
      %p241 = scmp.lt.s32.totalorder %s16, 3
      %p242 = pnand %p240, %p241
      %p243 = pneg %p242
      // Predicated region
      $region45: #{tpu_custom_call.1} parent=5 // pred_check
        _
      $region46: #{tpu_custom_call.1} parent=5 // pred_check_branch
        %245 = sbr.rel (%p242) target = $region48
      $region47: #{tpu_custom_call.1} parent=5 // pred_region
        %s246 = ssub.s32 %s16, 1
        %s247 = smul.u32 16, %s21
        %p248 = scmp.lt.s32.totalorder %s247, 31
        %s249 = scalar_select %p248, %s247, 31
        %s250 = smul.addr %s249, 8
        %s251 = scalar_lea.vmem %s0, %s250
        %p252 = pneg %p42
        %p253 = pneg %p39
        %p254 = pneg %p63
        %p255 = pneg %p60
        %p256 = pneg %p84
        %p257 = pneg %p81
        %p258 = pneg %p105
        %p259 = pneg %p102
        %p260 = pneg %p126
        %p261 = pneg %p123
        %p262 = pneg %p147
        %p263 = pneg %p144
        %p264 = pneg %p168
        %p265 = pneg %p165
        %p266 = pneg %p194
        %p267 = pneg %p191
        %s268 = sand.u32 %s181, 1
        %s269 = scalar_lea.sflag [#allocation3], %s268
        %s270 = sand.u32 %s181, 1
        %s271 = smul.addr %s270, 128
        %s272 = scalar_lea.vmem [#allocation2], %s271
        %s273 = smul.u32 16, %s21
        %p274 = scmp.lt.s32.totalorder %s273, 31
        %s275 = scalar_select %p274, %s273, 31
        %s276 = smul.addr %s275, 8
        %s277 = scalar_lea.vmem %s0, %s276
        %s278 = smul.u32 16, %s21
        %s279 = smul.u32 16, %s21
        %v280 = vld [vmem:[%s277] sm:$0xff]
        %v281 = vld [vmem:[%s277 + $0x8] sm:$0xff]
        %v282 = vld [vmem:[%s277 + $0x10] sm:$0xff]
        %v283 = vld [vmem:[%s277 + $0x18] sm:$0xff]
        %v284 = vld [vmem:[%s277 + $0x20] sm:$0xff]
        %v285 = vld [vmem:[%s277 + $0x28] sm:$0xff]
        %v286 = vld [vmem:[%s277 + $0x30] sm:$0xff]
        %v287 = vld [vmem:[%s277 + $0x38] sm:$0xff]
        %v288 = vld [vmem:[%s277 + $0x40] sm:$0xff]
        %v289 = vld [vmem:[%s277 + $0x48] sm:$0xff]
        %v290 = vld [vmem:[%s277 + $0x50] sm:$0xff]
        %v291 = vld [vmem:[%s277 + $0x58] sm:$0xff]
        %v292 = vld [vmem:[%s277 + $0x60] sm:$0xff]
        %v293 = vld [vmem:[%s277 + $0x68] sm:$0xff]
        %v294 = vld [vmem:[%s277 + $0x70] sm:$0xff]
        %v295 = vld [vmem:[%s277 + $0x78] sm:$0xff]
        %v296 = vld [vmem:[%s1] sm:$0xff]
        %v297 = vld [vmem:[%s1 + $0x8] sm:$0xff]
        %v298 = vld [vmem:[%s1 + $0x10] sm:$0xff]
        %v299 = vld [vmem:[%s1 + $0x18] sm:$0xff]
        %v300 = vld [vmem:[%s2] sm:$0x1]
        %v302 = vlaneseq
        %v303 = vshrl.u32 %v302, 7
        %v304 = vsub.s32 0, %v303
        %v305 = vrot.slane %v300, %v304
        %vm307 = vcmask 261120
        %v309 = vsel %vm307, %v280, 0
        %v312 = vsel %vm307, %v281, 0
        %v315 = vsel %vm307, %v282, 0
        %v318 = vsel %vm307, %v283, 0
        %v321 = vsel %vm307, %v284, 0
        %v324 = vsel %vm307, %v285, 0
        %v327 = vsel %vm307, %v286, 0
        %v330 = vsel %vm307, %v287, 0
        %v333 = vsel %vm307, %v288, 0
        %v336 = vsel %vm307, %v289, 0
        %v339 = vsel %vm307, %v290, 0
        %v342 = vsel %vm307, %v291, 0
        %v345 = vsel %vm307, %v292, 0
        %v348 = vsel %vm307, %v293, 0
        %v351 = vsel %vm307, %v294, 0
        %v354 = vsel %vm307, %v295, 0
        %356 = vmatprep.subr.mxu0 0.0
        %357 = vmatpush1.msra.mxu0 %v296
        %358 = vmatprep.subr.mxu0 0.0
        %359 = vmatpush1.msra.mxu0 %v297
        %360 = vmatprep.subr.mxu0 0.0
        %361 = vmatpush1.msra.mxu0 %v298
        %362 = vmatprep.subr.mxu0 0.0
        %363 = vmatpush1.msra.mxu0 %v299
        %364 = vmatprep.subr.mxu0 0.0
        %365 = vmatpush1.msra.mxu0 0.0
        %366 = vmatprep.subr.mxu0 0.0
        %367 = vmatpush1.msra.mxu0 0.0
        %368 = vmatprep.subr.mxu0 0.0
        %369 = vmatpush1.msra.mxu0 0.0
        %370 = vmatprep.subr.mxu0 0.0
        %371 = vmatpush1.msra.mxu0 0.0
        %372 = vmatprep.subr.mxu0 0.0
        %373 = vmatpush1.msra.mxu0 0.0
        %374 = vmatprep.subr.mxu0 0.0
        %375 = vmatpush1.msra.mxu0 0.0
        %376 = vmatprep.subr.mxu0 0.0
        %377 = vmatpush1.msra.mxu0 0.0
        %378 = vmatprep.subr.mxu0 0.0
        %379 = vmatpush1.msra.mxu0 0.0
        %380 = vmatprep.subr.mxu0 0.0
        %381 = vmatpush1.msra.mxu0 0.0
        %382 = vmatprep.subr.mxu0 0.0
        %383 = vmatpush1.msra.mxu0 0.0
        %384 = vmatprep.subr.mxu0 0.0
        %385 = vmatpush1.msra.mxu0 0.0
        %386 = vmatprep.subr.mxu0 0.0
        %387 = vmatpush1.msra.mxu0 0.0
        %388 = vmatprep.subr.mxu0 0.0
        %389 = vmatpush1.msra.mxu0 0.0
        %390 = vmatprep.subr.mxu0 0.0
        %391 = vmatpush1.msra.mxu0 0.0
        %392 = vmatprep.subr.mxu0 0.0
        %393 = vmatpush1.msra.mxu0 0.0
        %394 = vmatprep.subr.mxu0 0.0
        %395 = vmatpush1.msra.mxu0 0.0
        %396 = vmatprep.subr.mxu0 0.0
        %397 = vmatpush1.msra.mxu0 0.0
        %398 = vmatprep.subr.mxu0 0.0
        %399 = vmatpush1.msra.mxu0 0.0
        %400 = vmatprep.subr.mxu0 0.0
        %401 = vmatpush1.msra.mxu0 0.0
        %402 = vmatprep.subr.mxu0 0.0
        %403 = vmatpush1.msra.mxu0 0.0
        %404 = vmatprep.subr.mxu0 0.0
        %405 = vmatpush1.msra.mxu0 0.0
        %406 = vmatprep.subr.mxu0 0.0
        %407 = vmatpush1.msra.mxu0 0.0
        %408 = vmatprep.subr.mxu0 0.0
        %409 = vmatpush1.msra.mxu0 0.0
        %410 = vmatprep.subr.mxu0 0.0
        %411 = vmatpush1.msra.mxu0 0.0
        %412 = vmatprep.subr.mxu0 0.0
        %413 = vmatpush1.msra.mxu0 0.0
        %414 = vmatprep.subr.mxu0 0.0
        %415 = vmatpush1.msra.mxu0 0.0
        %416 = vmatprep.subr.mxu0 0.0
        %417 = vmatpush1.msra.mxu0 0.0
        %418 = vmatprep.subr.mxu0 0.0
        %419 = vmatpush1.msra.mxu0 0.0
        %420 = vmatprep.mubr.f32.mxu0 0.0
        %421 = vmatmul.mubr.f32.gmra.mrb[0].mxu0 %v309
        %v422 = vpop.f32.mrb[0].mxu0
        %v423 = vadd.f32 %v305, %v422
        %v424 = vpop.f32.mrb[0].mxu0
        %425 = vmatprep.mubr.f32.mxu0 0.0
        %426 = vmatmul.mubr.f32.gmra.mrb[0].mxu0 %v312
        %v427 = vpop.f32.mrb[0].mxu0
        %v428 = vadd.f32 %v305, %v427
        %v429 = vpop.f32.mrb[0].mxu0
        %430 = vmatprep.mubr.f32.mxu0 0.0
        %431 = vmatmul.mubr.f32.gmra.mrb[0].mxu0 %v315
        %v432 = vpop.f32.mrb[0].mxu0
        %v433 = vadd.f32 %v305, %v432
        %v434 = vpop.f32.mrb[0].mxu0
        %435 = vmatprep.mubr.f32.mxu0 0.0
        %436 = vmatmul.mubr.f32.gmra.mrb[0].mxu0 %v318
        %v437 = vpop.f32.mrb[0].mxu0
        %v438 = vadd.f32 %v305, %v437
        %v439 = vpop.f32.mrb[0].mxu0
        %440 = vmatprep.mubr.f32.mxu0 0.0
        %441 = vmatmul.mubr.f32.gmra.mrb[0].mxu0 %v321
        %v442 = vpop.f32.mrb[0].mxu0
        %v443 = vadd.f32 %v305, %v442
        %v444 = vpop.f32.mrb[0].mxu0
        %445 = vmatprep.mubr.f32.mxu0 0.0
        %446 = vmatmul.mubr.f32.gmra.mrb[0].mxu0 %v324
        %v447 = vpop.f32.mrb[0].mxu0
        %v448 = vadd.f32 %v305, %v447
        %v449 = vpop.f32.mrb[0].mxu0
        %450 = vmatprep.mubr.f32.mxu0 0.0
        %451 = vmatmul.mubr.f32.gmra.mrb[0].mxu0 %v327
        %v452 = vpop.f32.mrb[0].mxu0
        %v453 = vadd.f32 %v305, %v452
        %v454 = vpop.f32.mrb[0].mxu0
        %455 = vmatprep.mubr.f32.mxu0 0.0
        %456 = vmatmul.mubr.f32.gmra.mrb[0].mxu0 %v330
        %v457 = vpop.f32.mrb[0].mxu0
        %v458 = vadd.f32 %v305, %v457
        %v459 = vpop.f32.mrb[0].mxu0
        %460 = vmatprep.mubr.f32.mxu0 0.0
        %461 = vmatmul.mubr.f32.gmra.mrb[0].mxu0 %v333
        %v462 = vpop.f32.mrb[0].mxu0
        %v463 = vadd.f32 %v305, %v462
        %v464 = vpop.f32.mrb[0].mxu0
        %465 = vmatprep.mubr.f32.mxu0 0.0
        %466 = vmatmul.mubr.f32.gmra.mrb[0].mxu0 %v336
        %v467 = vpop.f32.mrb[0].mxu0
        %v468 = vadd.f32 %v305, %v467
        %v469 = vpop.f32.mrb[0].mxu0
        %470 = vmatprep.mubr.f32.mxu0 0.0
        %471 = vmatmul.mubr.f32.gmra.mrb[0].mxu0 %v339
        %v472 = vpop.f32.mrb[0].mxu0
        %v473 = vadd.f32 %v305, %v472
        %v474 = vpop.f32.mrb[0].mxu0
        %475 = vmatprep.mubr.f32.mxu0 0.0
        %476 = vmatmul.mubr.f32.gmra.mrb[0].mxu0 %v342
        %v477 = vpop.f32.mrb[0].mxu0
        %v478 = vadd.f32 %v305, %v477
        %v479 = vpop.f32.mrb[0].mxu0
        %480 = vmatprep.mubr.f32.mxu0 0.0
        %481 = vmatmul.mubr.f32.gmra.mrb[0].mxu0 %v345
        %v482 = vpop.f32.mrb[0].mxu0
        %v483 = vadd.f32 %v305, %v482
        %v484 = vpop.f32.mrb[0].mxu0
        %485 = vmatprep.mubr.f32.mxu0 0.0
        %486 = vmatmul.mubr.f32.gmra.mrb[0].mxu0 %v348
        %v487 = vpop.f32.mrb[0].mxu0
        %v488 = vadd.f32 %v305, %v487
        %v489 = vpop.f32.mrb[0].mxu0
        %490 = vmatprep.mubr.f32.mxu0 0.0
        %491 = vmatmul.mubr.f32.gmra.mrb[0].mxu0 %v351
        %v492 = vpop.f32.mrb[0].mxu0
        %v493 = vadd.f32 %v305, %v492
        %v494 = vpop.f32.mrb[0].mxu0
        %495 = vmatprep.mubr.f32.mxu0 0.0
        %496 = vmatmul.mubr.f32.gmra.mrb[0].mxu0 %v354
        %v497 = vpop.f32.mrb[0].mxu0
        %v498 = vadd.f32 %v305, %v497
        %v499 = vpop.f32.mrb[0].mxu0
        %500 = vdwg.mxu0
        %v501 = vmul.f32 %v423, 0.1
        %v502 = vmul.f32 %v428, 0.1
        %v503 = vmul.f32 %v433, 0.1
        %v504 = vmul.f32 %v438, 0.1
        %v505 = vmul.f32 %v443, 0.1
        %v506 = vmul.f32 %v448, 0.1
        %v507 = vmul.f32 %v453, 0.1
        %v508 = vmul.f32 %v458, 0.1
        %v509 = vmul.f32 %v463, 0.1
        %v510 = vmul.f32 %v468, 0.1
        %v511 = vmul.f32 %v473, 0.1
        %v512 = vmul.f32 %v478, 0.1
        %v513 = vmul.f32 %v483, 0.1
        %v514 = vmul.f32 %v488, 0.1
        %v515 = vmul.f32 %v493, 0.1
        %v516 = vmul.f32 %v498, 0.1
        %v517 = vmax.f32 %v423, %v501
        %v518 = vmax.f32 %v428, %v502
        %v519 = vmax.f32 %v433, %v503
        %v520 = vmax.f32 %v438, %v504
        %v521 = vmax.f32 %v443, %v505
        %v522 = vmax.f32 %v448, %v506
        %v523 = vmax.f32 %v453, %v507
        %v524 = vmax.f32 %v458, %v508
        %v525 = vmax.f32 %v463, %v509
        %v526 = vmax.f32 %v468, %v510
        %v527 = vmax.f32 %v473, %v511
        %v528 = vmax.f32 %v478, %v512
        %v529 = vmax.f32 %v483, %v513
        %v530 = vmax.f32 %v488, %v514
        %v531 = vmax.f32 %v493, %v515
        %v532 = vmax.f32 %v498, %v516
        %v533 = vld [vmem:[%s3] sm:$0xff]
        %v534 = vld [vmem:[%s3 + $0x8] sm:$0xff]
        %v535 = vld [vmem:[%s3 + $0x10] sm:$0xff]
        %v536 = vld [vmem:[%s4] sm:$0x1]
        %v538 = vlaneseq
        %v539 = vshrl.u32 %v538, 7
        %v540 = vsub.s32 0, %v539
        %v541 = vrot.slane %v536, %v540
        %vm543 = vcmask 195584
        %v545 = vsel %vm543, %v517, 0
        %v548 = vsel %vm543, %v518, 0
        %v551 = vsel %vm543, %v519, 0
        %v554 = vsel %vm543, %v520, 0
        %v557 = vsel %vm543, %v521, 0
        %v560 = vsel %vm543, %v522, 0
        %v563 = vsel %vm543, %v523, 0
        %v566 = vsel %vm543, %v524, 0
        %v569 = vsel %vm543, %v525, 0
        %v572 = vsel %vm543, %v526, 0
        %v575 = vsel %vm543, %v527, 0
        %v578 = vsel %vm543, %v528, 0
        %v581 = vsel %vm543, %v529, 0
        %v584 = vsel %vm543, %v530, 0
        %v587 = vsel %vm543, %v531, 0
        %v590 = vsel %vm543, %v532, 0
        %592 = vmatprep.subr.mxu0 0.0
        %593 = vmatpush1.msra.mxu0 %v533
        %594 = vmatprep.subr.mxu0 0.0
        %595 = vmatpush1.msra.mxu0 %v534
        %596 = vmatprep.subr.mxu0 0.0
        %597 = vmatpush1.msra.mxu0 %v535
        %598 = vmatprep.subr.mxu0 0.0
        %599 = vmatpush1.msra.mxu0 0.0
        %600 = vmatprep.subr.mxu0 0.0
        %601 = vmatpush1.msra.mxu0 0.0
        %602 = vmatprep.subr.mxu0 0.0
        %603 = vmatpush1.msra.mxu0 0.0
        %604 = vmatprep.subr.mxu0 0.0
        %605 = vmatpush1.msra.mxu0 0.0
        %606 = vmatprep.subr.mxu0 0.0
        %607 = vmatpush1.msra.mxu0 0.0
        %608 = vmatprep.subr.mxu0 0.0
        %609 = vmatpush1.msra.mxu0 0.0
        %610 = vmatprep.subr.mxu0 0.0
        %611 = vmatpush1.msra.mxu0 0.0
        %612 = vmatprep.subr.mxu0 0.0
        %613 = vmatpush1.msra.mxu0 0.0
        %614 = vmatprep.subr.mxu0 0.0
        %615 = vmatpush1.msra.mxu0 0.0
        %616 = vmatprep.subr.mxu0 0.0
        %617 = vmatpush1.msra.mxu0 0.0
        %618 = vmatprep.subr.mxu0 0.0
        %619 = vmatpush1.msra.mxu0 0.0
        %620 = vmatprep.subr.mxu0 0.0
        %621 = vmatpush1.msra.mxu0 0.0
        %622 = vmatprep.subr.mxu0 0.0
        %623 = vmatpush1.msra.mxu0 0.0
        %624 = vmatprep.subr.mxu0 0.0
        %625 = vmatpush1.msra.mxu0 0.0
        %626 = vmatprep.subr.mxu0 0.0
        %627 = vmatpush1.msra.mxu0 0.0
        %628 = vmatprep.subr.mxu0 0.0
        %629 = vmatpush1.msra.mxu0 0.0
        %630 = vmatprep.subr.mxu0 0.0
        %631 = vmatpush1.msra.mxu0 0.0
        %632 = vmatprep.subr.mxu0 0.0
        %633 = vmatpush1.msra.mxu0 0.0
        %634 = vmatprep.subr.mxu0 0.0
        %635 = vmatpush1.msra.mxu0 0.0
        %636 = vmatprep.subr.mxu0 0.0
        %637 = vmatpush1.msra.mxu0 0.0
        %638 = vmatprep.subr.mxu0 0.0
        %639 = vmatpush1.msra.mxu0 0.0
        %640 = vmatprep.subr.mxu0 0.0
        %641 = vmatpush1.msra.mxu0 0.0
        %642 = vmatprep.subr.mxu0 0.0
        %643 = vmatpush1.msra.mxu0 0.0
        %644 = vmatprep.subr.mxu0 0.0
        %645 = vmatpush1.msra.mxu0 0.0
        %646 = vmatprep.subr.mxu0 0.0
        %647 = vmatpush1.msra.mxu0 0.0
        %648 = vmatprep.subr.mxu0 0.0
        %649 = vmatpush1.msra.mxu0 0.0
        %650 = vmatprep.subr.mxu0 0.0
        %651 = vmatpush1.msra.mxu0 0.0
        %652 = vmatprep.subr.mxu0 0.0
        %653 = vmatpush1.msra.mxu0 0.0
        %654 = vmatprep.subr.mxu0 0.0
        %655 = vmatpush1.msra.mxu0 0.0
        %656 = vmatprep.mubr.f32.mxu0 0.0
        %657 = vmatmul.mubr.f32.gmra.mrb[0].mxu0 %v545
        %v658 = vpop.f32.mrb[0].mxu0
        %v659 = vadd.f32 %v541, %v658
        %v660 = vpop.f32.mrb[0].mxu0
        %661 = vmatprep.mubr.f32.mxu0 0.0
        %662 = vmatmul.mubr.f32.gmra.mrb[0].mxu0 %v548
        %v663 = vpop.f32.mrb[0].mxu0
        %v664 = vadd.f32 %v541, %v663
        %v665 = vpop.f32.mrb[0].mxu0
        %666 = vmatprep.mubr.f32.mxu0 0.0
        %667 = vmatmul.mubr.f32.gmra.mrb[0].mxu0 %v551
        %v668 = vpop.f32.mrb[0].mxu0
        %v669 = vadd.f32 %v541, %v668
        %v670 = vpop.f32.mrb[0].mxu0
        %671 = vmatprep.mubr.f32.mxu0 0.0
        %672 = vmatmul.mubr.f32.gmra.mrb[0].mxu0 %v554
        %v673 = vpop.f32.mrb[0].mxu0
        %v674 = vadd.f32 %v541, %v673
        %v675 = vpop.f32.mrb[0].mxu0
        %676 = vmatprep.mubr.f32.mxu0 0.0
        %677 = vmatmul.mubr.f32.gmra.mrb[0].mxu0 %v557
        %v678 = vpop.f32.mrb[0].mxu0
        %v679 = vadd.f32 %v541, %v678
        %v680 = vpop.f32.mrb[0].mxu0
        %681 = vmatprep.mubr.f32.mxu0 0.0
        %682 = vmatmul.mubr.f32.gmra.mrb[0].mxu0 %v560
        %v683 = vpop.f32.mrb[0].mxu0
        %v684 = vadd.f32 %v541, %v683
        %v685 = vpop.f32.mrb[0].mxu0
        %686 = vmatprep.mubr.f32.mxu0 0.0
        %687 = vmatmul.mubr.f32.gmra.mrb[0].mxu0 %v563
        %v688 = vpop.f32.mrb[0].mxu0
        %v689 = vadd.f32 %v541, %v688
        %v690 = vpop.f32.mrb[0].mxu0
        %691 = vmatprep.mubr.f32.mxu0 0.0
        %692 = vmatmul.mubr.f32.gmra.mrb[0].mxu0 %v566
        %v693 = vpop.f32.mrb[0].mxu0
        %v694 = vadd.f32 %v541, %v693
        %v695 = vpop.f32.mrb[0].mxu0
        %696 = vmatprep.mubr.f32.mxu0 0.0
        %697 = vmatmul.mubr.f32.gmra.mrb[0].mxu0 %v569
        %v698 = vpop.f32.mrb[0].mxu0
        %v699 = vadd.f32 %v541, %v698
        %v700 = vpop.f32.mrb[0].mxu0
        %701 = vmatprep.mubr.f32.mxu0 0.0
        %702 = vmatmul.mubr.f32.gmra.mrb[0].mxu0 %v572
        %v703 = vpop.f32.mrb[0].mxu0
        %v704 = vadd.f32 %v541, %v703
        %v705 = vpop.f32.mrb[0].mxu0
        %706 = vmatprep.mubr.f32.mxu0 0.0
        %707 = vmatmul.mubr.f32.gmra.mrb[0].mxu0 %v575
        %v708 = vpop.f32.mrb[0].mxu0
        %v709 = vadd.f32 %v541, %v708
        %v710 = vpop.f32.mrb[0].mxu0
        %711 = vmatprep.mubr.f32.mxu0 0.0
        %712 = vmatmul.mubr.f32.gmra.mrb[0].mxu0 %v578
        %v713 = vpop.f32.mrb[0].mxu0
        %v714 = vadd.f32 %v541, %v713
        %v715 = vpop.f32.mrb[0].mxu0
        %716 = vmatprep.mubr.f32.mxu0 0.0
        %717 = vmatmul.mubr.f32.gmra.mrb[0].mxu0 %v581
        %v718 = vpop.f32.mrb[0].mxu0
        %v719 = vadd.f32 %v541, %v718
        %v720 = vpop.f32.mrb[0].mxu0
        %721 = vmatprep.mubr.f32.mxu0 0.0
        %722 = vmatmul.mubr.f32.gmra.mrb[0].mxu0 %v584
        %v723 = vpop.f32.mrb[0].mxu0
        %v724 = vadd.f32 %v541, %v723
        %v725 = vpop.f32.mrb[0].mxu0
        %726 = vmatprep.mubr.f32.mxu0 0.0
        %727 = vmatmul.mubr.f32.gmra.mrb[0].mxu0 %v587
        %v728 = vpop.f32.mrb[0].mxu0
        %v729 = vadd.f32 %v541, %v728
        %v730 = vpop.f32.mrb[0].mxu0
        %731 = vmatprep.mubr.f32.mxu0 0.0
        %732 = vmatmul.mubr.f32.gmra.mrb[0].mxu0 %v590
        %v733 = vpop.f32.mrb[0].mxu0
        %v734 = vadd.f32 %v541, %v733
        %v735 = vpop.f32.mrb[0].mxu0
        %736 = vdwg.mxu0
        %v737 = vmul.f32 %v659, 0.1
        %v738 = vmul.f32 %v664, 0.1
        %v739 = vmul.f32 %v669, 0.1
        %v740 = vmul.f32 %v674, 0.1
        %v741 = vmul.f32 %v679, 0.1
        %v742 = vmul.f32 %v684, 0.1
        %v743 = vmul.f32 %v689, 0.1
        %v744 = vmul.f32 %v694, 0.1
        %v745 = vmul.f32 %v699, 0.1
        %v746 = vmul.f32 %v704, 0.1
        %v747 = vmul.f32 %v709, 0.1
        %v748 = vmul.f32 %v714, 0.1
        %v749 = vmul.f32 %v719, 0.1
        %v750 = vmul.f32 %v724, 0.1
        %v751 = vmul.f32 %v729, 0.1
        %v752 = vmul.f32 %v734, 0.1
        %v753 = vmax.f32 %v659, %v737
        %v754 = vmax.f32 %v664, %v738
        %v755 = vmax.f32 %v669, %v739
        %v756 = vmax.f32 %v674, %v740
        %v757 = vmax.f32 %v679, %v741
        %v758 = vmax.f32 %v684, %v742
        %v759 = vmax.f32 %v689, %v743
        %v760 = vmax.f32 %v694, %v744
        %v761 = vmax.f32 %v699, %v745
        %v762 = vmax.f32 %v704, %v746
        %v763 = vmax.f32 %v709, %v747
        %v764 = vmax.f32 %v714, %v748
        %v765 = vmax.f32 %v719, %v749
        %v766 = vmax.f32 %v724, %v750
        %v767 = vmax.f32 %v729, %v751
        %v768 = vmax.f32 %v734, %v752
        %v769 = vld [vmem:[%s5] sm:$0xff]
        %v770 = vld [vmem:[%s5 + $0x8] sm:$0xff]
        %v771 = vld [vmem:[%s6] sm:$0x1]
        %v773 = vlaneseq
        %v774 = vshrl.u32 %v773, 7
        %v775 = vsub.s32 0, %v774
        %v776 = vrot.slane %v771, %v775
        %vm778 = vcmask 130048
        %v780 = vsel %vm778, %v753, 0
        %v783 = vsel %vm778, %v754, 0
        %v786 = vsel %vm778, %v755, 0
        %v789 = vsel %vm778, %v756, 0
        %v792 = vsel %vm778, %v757, 0
        %v795 = vsel %vm778, %v758, 0
        %v798 = vsel %vm778, %v759, 0
        %v801 = vsel %vm778, %v760, 0
        %v804 = vsel %vm778, %v761, 0
        %v807 = vsel %vm778, %v762, 0
        %v810 = vsel %vm778, %v763, 0
        %v813 = vsel %vm778, %v764, 0
        %v816 = vsel %vm778, %v765, 0
        %v819 = vsel %vm778, %v766, 0
        %v822 = vsel %vm778, %v767, 0
        %v825 = vsel %vm778, %v768, 0
        %827 = vmatprep.subr.mxu0 0.0
        %828 = vmatpush1.msra.mxu0 %v769
        %829 = vmatprep.subr.mxu0 0.0
        %830 = vmatpush1.msra.mxu0 %v770
        %831 = vmatprep.subr.mxu0 0.0
        %832 = vmatpush1.msra.mxu0 0.0
        %833 = vmatprep.subr.mxu0 0.0
        %834 = vmatpush1.msra.mxu0 0.0
        %835 = vmatprep.subr.mxu0 0.0
        %836 = vmatpush1.msra.mxu0 0.0
        %837 = vmatprep.subr.mxu0 0.0
        %838 = vmatpush1.msra.mxu0 0.0
        %839 = vmatprep.subr.mxu0 0.0
        %840 = vmatpush1.msra.mxu0 0.0
        %841 = vmatprep.subr.mxu0 0.0
        %842 = vmatpush1.msra.mxu0 0.0
        %843 = vmatprep.subr.mxu0 0.0
        %844 = vmatpush1.msra.mxu0 0.0
        %845 = vmatprep.subr.mxu0 0.0
        %846 = vmatpush1.msra.mxu0 0.0
        %847 = vmatprep.subr.mxu0 0.0
        %848 = vmatpush1.msra.mxu0 0.0
        %849 = vmatprep.subr.mxu0 0.0
        %850 = vmatpush1.msra.mxu0 0.0
        %851 = vmatprep.subr.mxu0 0.0
        %852 = vmatpush1.msra.mxu0 0.0
        %853 = vmatprep.subr.mxu0 0.0
        %854 = vmatpush1.msra.mxu0 0.0
        %855 = vmatprep.subr.mxu0 0.0
        %856 = vmatpush1.msra.mxu0 0.0
        %857 = vmatprep.subr.mxu0 0.0
        %858 = vmatpush1.msra.mxu0 0.0
        %859 = vmatprep.subr.mxu0 0.0
        %860 = vmatpush1.msra.mxu0 0.0
        %861 = vmatprep.subr.mxu0 0.0
        %862 = vmatpush1.msra.mxu0 0.0
        %863 = vmatprep.subr.mxu0 0.0
        %864 = vmatpush1.msra.mxu0 0.0
        %865 = vmatprep.subr.mxu0 0.0
        %866 = vmatpush1.msra.mxu0 0.0
        %867 = vmatprep.subr.mxu0 0.0
        %868 = vmatpush1.msra.mxu0 0.0
        %869 = vmatprep.subr.mxu0 0.0
        %870 = vmatpush1.msra.mxu0 0.0
        %871 = vmatprep.subr.mxu0 0.0
        %872 = vmatpush1.msra.mxu0 0.0
        %873 = vmatprep.subr.mxu0 0.0
        %874 = vmatpush1.msra.mxu0 0.0
        %875 = vmatprep.subr.mxu0 0.0
        %876 = vmatpush1.msra.mxu0 0.0
        %877 = vmatprep.subr.mxu0 0.0
        %878 = vmatpush1.msra.mxu0 0.0
        %879 = vmatprep.subr.mxu0 0.0
        %880 = vmatpush1.msra.mxu0 0.0
        %881 = vmatprep.subr.mxu0 0.0
        %882 = vmatpush1.msra.mxu0 0.0
        %883 = vmatprep.subr.mxu0 0.0
        %884 = vmatpush1.msra.mxu0 0.0
        %885 = vmatprep.subr.mxu0 0.0
        %886 = vmatpush1.msra.mxu0 0.0
        %887 = vmatprep.subr.mxu0 0.0
        %888 = vmatpush1.msra.mxu0 0.0
        %889 = vmatprep.subr.mxu0 0.0
        %890 = vmatpush1.msra.mxu0 0.0
        %891 = vmatprep.mubr.f32.mxu0 0.0
        %892 = vmatmul.mubr.f32.gmra.mrb[0].mxu0 %v780
        %v893 = vpop.f32.mrb[0].mxu0
        %v894 = vadd.f32 %v776, %v893
        %v895 = vpop.f32.mrb[0].mxu0
        %896 = vmatprep.mubr.f32.mxu0 0.0
        %897 = vmatmul.mubr.f32.gmra.mrb[0].mxu0 %v783
        %v898 = vpop.f32.mrb[0].mxu0
        %v899 = vadd.f32 %v776, %v898
        %v900 = vpop.f32.mrb[0].mxu0
        %901 = vmatprep.mubr.f32.mxu0 0.0
        %902 = vmatmul.mubr.f32.gmra.mrb[0].mxu0 %v786
        %v903 = vpop.f32.mrb[0].mxu0
        %v904 = vadd.f32 %v776, %v903
        %v905 = vpop.f32.mrb[0].mxu0
        %906 = vmatprep.mubr.f32.mxu0 0.0
        %907 = vmatmul.mubr.f32.gmra.mrb[0].mxu0 %v789
        %v908 = vpop.f32.mrb[0].mxu0
        %v909 = vadd.f32 %v776, %v908
        %v910 = vpop.f32.mrb[0].mxu0
        %911 = vmatprep.mubr.f32.mxu0 0.0
        %912 = vmatmul.mubr.f32.gmra.mrb[0].mxu0 %v792
        %v913 = vpop.f32.mrb[0].mxu0
        %v914 = vadd.f32 %v776, %v913
        %v915 = vpop.f32.mrb[0].mxu0
        %916 = vmatprep.mubr.f32.mxu0 0.0
        %917 = vmatmul.mubr.f32.gmra.mrb[0].mxu0 %v795
        %v918 = vpop.f32.mrb[0].mxu0
        %v919 = vadd.f32 %v776, %v918
        %v920 = vpop.f32.mrb[0].mxu0
        %921 = vmatprep.mubr.f32.mxu0 0.0
        %922 = vmatmul.mubr.f32.gmra.mrb[0].mxu0 %v798
        %v923 = vpop.f32.mrb[0].mxu0
        %v924 = vadd.f32 %v776, %v923
        %v925 = vpop.f32.mrb[0].mxu0
        %926 = vmatprep.mubr.f32.mxu0 0.0
        %927 = vmatmul.mubr.f32.gmra.mrb[0].mxu0 %v801
        %v928 = vpop.f32.mrb[0].mxu0
        %v929 = vadd.f32 %v776, %v928
        %v930 = vpop.f32.mrb[0].mxu0
        %931 = vmatprep.mubr.f32.mxu0 0.0
        %932 = vmatmul.mubr.f32.gmra.mrb[0].mxu0 %v804
        %v933 = vpop.f32.mrb[0].mxu0
        %v934 = vadd.f32 %v776, %v933
        %v935 = vpop.f32.mrb[0].mxu0
        %936 = vmatprep.mubr.f32.mxu0 0.0
        %937 = vmatmul.mubr.f32.gmra.mrb[0].mxu0 %v807
        %v938 = vpop.f32.mrb[0].mxu0
        %v939 = vadd.f32 %v776, %v938
        %v940 = vpop.f32.mrb[0].mxu0
        %941 = vmatprep.mubr.f32.mxu0 0.0
        %942 = vmatmul.mubr.f32.gmra.mrb[0].mxu0 %v810
        %v943 = vpop.f32.mrb[0].mxu0
        %v944 = vadd.f32 %v776, %v943
        %v945 = vpop.f32.mrb[0].mxu0
        %946 = vmatprep.mubr.f32.mxu0 0.0
        %947 = vmatmul.mubr.f32.gmra.mrb[0].mxu0 %v813
        %v948 = vpop.f32.mrb[0].mxu0
        %v949 = vadd.f32 %v776, %v948
        %v950 = vpop.f32.mrb[0].mxu0
        %951 = vmatprep.mubr.f32.mxu0 0.0
        %952 = vmatmul.mubr.f32.gmra.mrb[0].mxu0 %v816
        %v953 = vpop.f32.mrb[0].mxu0
        %v954 = vadd.f32 %v776, %v953
        %v955 = vpop.f32.mrb[0].mxu0
        %956 = vmatprep.mubr.f32.mxu0 0.0
        %957 = vmatmul.mubr.f32.gmra.mrb[0].mxu0 %v819
        %v958 = vpop.f32.mrb[0].mxu0
        %v959 = vadd.f32 %v776, %v958
        %v960 = vpop.f32.mrb[0].mxu0
        %961 = vmatprep.mubr.f32.mxu0 0.0
        %962 = vmatmul.mubr.f32.gmra.mrb[0].mxu0 %v822
        %v963 = vpop.f32.mrb[0].mxu0
        %v964 = vadd.f32 %v776, %v963
        %v965 = vpop.f32.mrb[0].mxu0
        %966 = vmatprep.mubr.f32.mxu0 0.0
        %967 = vmatmul.mubr.f32.gmra.mrb[0].mxu0 %v825
        %v968 = vpop.f32.mrb[0].mxu0
        %v969 = vadd.f32 %v776, %v968
        %v970 = vpop.f32.mrb[0].mxu0
        %971 = vdwg.mxu0
        %972 = vst [vmem:[%s272] sm:$0xff] %v894
        %973 = vst [vmem:[%s272 + $0x8] sm:$0xff] %v899
        %974 = vst [vmem:[%s272 + $0x10] sm:$0xff] %v904
        %975 = vst [vmem:[%s272 + $0x18] sm:$0xff] %v909
        %976 = vst [vmem:[%s272 + $0x20] sm:$0xff] %v914
        %977 = vst [vmem:[%s272 + $0x28] sm:$0xff] %v919
        %978 = vst [vmem:[%s272 + $0x30] sm:$0xff] %v924
        %979 = vst [vmem:[%s272 + $0x38] sm:$0xff] %v929
        %980 = vst [vmem:[%s272 + $0x40] sm:$0xff] %v934
        %981 = vst [vmem:[%s272 + $0x48] sm:$0xff] %v939
        %982 = vst [vmem:[%s272 + $0x50] sm:$0xff] %v944
        %983 = vst [vmem:[%s272 + $0x58] sm:$0xff] %v949
        %984 = vst [vmem:[%s272 + $0x60] sm:$0xff] %v954
        %985 = vst [vmem:[%s272 + $0x68] sm:$0xff] %v959
        %986 = vst [vmem:[%s272 + $0x70] sm:$0xff] %v964
        %987 = vst [vmem:[%s272 + $0x78] sm:$0xff] %v969
        %s988 = sand.u32 %s181, 1
        %s989 = scalar_lea.sflag [#allocation3], %s988
        %s990 = sand.u32 %s181, 1
        %s991 = smul.addr %s990, 128
        %s992 = scalar_lea.vmem [#allocation2], %s991
        // Predicated region
        $region49: #{tpu_custom_call.1} parent=47 // pred_check
          %p993 = pneg %p191
        $region50: #{tpu_custom_call.1} parent=47 // pred_check_branch
          %995 = sbr.rel (%p993) target = $region52
        $region51: #{tpu_custom_call.1} parent=47 // pred_region
          %s996 = smul.u32 16, %s21
          %s998 = ssub.s32 2048, 2048
          %999 = vsyncadd %s989, %s998
          %s1000 = smul.addr %s996, 128
          %s1001 = scalar_lea.hbm %s7, %s1000
          %s1002 = sshll.u32 %s992, 4
          %s1003 = int_to_ptr.vmem [resolvable:$true] %s1002
          %1008 = dma.vmem_to_hbm [thread:$0]  %s1003, 2048, %s1001, %s989, 128, 128, 8
        $region52: #{tpu_custom_call.1} parent=47 // pred_fallthru
          _
      $region48: #{tpu_custom_call.1} parent=5 // pred_fallthru
        _
      %p1009 = scmp.le.s32.totalorder 2, %s16
      // Predicated region
      $region53: #{tpu_custom_call.1} parent=5 // pred_check
        %p1010 = pneg %p1009
      $region54: #{tpu_custom_call.1} parent=5 // pred_check_branch
        %1012 = sbr.rel (%p1010) target = $region56
      $region55: #{tpu_custom_call.1} parent=5 // pred_region
        %s1013 = ssub.s32 %s16, 2
        // Predicated region
        $region57: #{tpu_custom_call.1} parent=55 // pred_check
          %p1014 = pneg %p197
        $region58: #{tpu_custom_call.1} parent=55 // pred_check_branch
          %1016 = sbr.rel (%p1014) target = $region60
        $region59: #{tpu_custom_call.1} parent=55 // pred_region
          %s1017 = sand.u32 %s182, 1
          %s1018 = scalar_lea.sflag [#allocation3], %s1017
          %s1019 = sand.u32 %s182, 1
          %s1020 = smul.addr %s1019, 128
          %s1021 = scalar_lea.vmem [#allocation2], %s1020
          %1022 = dma.done %s1018, 2048
        $region60: #{tpu_custom_call.1} parent=55 // pred_fallthru
          _
      $region56: #{tpu_custom_call.1} parent=5 // pred_fallthru
        _
    $region6: #{tpu_custom_call.1} parent=1 // loop_footer
      %s20 = sadd.s32 1, %s16
    $region7: #{tpu_custom_call.1} parent=1 // loop_footer_branch
      %15 = sbr.rel target = $region3
    $region8: #{tpu_custom_call.1} parent=1 // loop_exit
      _
    %1023 = vsyncpa [#allocation3], 1
    %s1024 = scalar_lea.sflag [#allocation3], 1
    %1025 = vsyncpa %s1024, 1

</llo_original>
